<compile_context>
chip_gen: v7x
topology: tpu7x:2x2x1
jax: 0.10.0
libtpu: 0.0.40
codegen_flags: <defaults>
</compile_context>

<pallas_src>
import math

import jax
import jax.numpy as jnp
from jax.experimental import pallas as pl
from jax.experimental.pallas import tpu as pltpu

_LANE = 128
_SUBLANE = 8
_ENERGY_TILE_BYTES = 2 * 1024 * 1024  # f32 bytes per energy row-tile (double-buffered x2)


def _round_up(n, m):
    return ((n + m - 1) // m) * m


def _pad2d(x, rows, cols):
    r, c = x.shape
    if r == rows and c == cols:
        return x
    return jnp.pad(x, ((0, rows - r), (0, cols - c)))


def _vmem_capacity_bytes():
    try:
        info = pltpu.get_tpu_info()
        cap = getattr(info, "vmem_capacity_bytes", None)
        if cap:
            return int(cap)
    except Exception:
        pass
    return 64 * 1024 * 1024  # conservative (v7x per-TC)


def _pick_tile(dim_p, max_tile=512):
    """Largest tile <= max_tile dividing dim_p; prefer multiples of 256 (v6e/v7x MXU)."""
    if dim_p <= max_tile:
        return dim_p
    for step in (256, 128):
        cand = 0
        t = step
        while t <= max_tile:
            if dim_p % t == 0:
                cand = t
            t += step
        if cand:
            return cand
    return _LANE


# ----------------------------------------------------------------------------
# Pallas kernels
# ----------------------------------------------------------------------------
def _abs_sum_kernel(x_ref, o_ref, acc_ref):
    # Gridded abs-sum over row tiles; SMEM scalar accumulator, init/finalize via pl.when.
    i = pl.program_id(0)

    @pl.when(i == 0)
    def _():
        acc_ref[0, 0] = jnp.float32(0.0)

    acc_ref[0, 0] += jnp.sum(jnp.abs(x_ref[...]))

    @pl.when(i == pl.num_programs(0) - 1)
    def _():
        o_ref[0, 0] = acc_ref[0, 0]


def _abs_sum_energy(arr, row_tile_hint=None):
    """sum(|arr|) as a (1,1) f32 device array, via a row-tiled Pallas reduction."""
    x2 = jnp.asarray(arr, jnp.float32)
    if x2.ndim == 0:
        x2 = x2.reshape(1, 1)
    elif x2.ndim == 1:
        x2 = x2.reshape(1, -1)
    else:
        x2 = x2.reshape(-1, x2.shape[-1])
    rows, cols = x2.shape
    cols_p = max(_LANE, _round_up(cols, _LANE))
    cap = max(_SUBLANE, (_ENERGY_TILE_BYTES // (cols_p * 4)) // _SUBLANE * _SUBLANE)
    tr = min(cap, 1024, _round_up(max(rows, 1), _SUBLANE))
    if row_tile_hint is not None:
        tr = min(tr, max(_SUBLANE, int(row_tile_hint)))
    tr = max(_SUBLANE, (tr // _SUBLANE) * _SUBLANE)
    rows_p = _round_up(max(rows, 1), tr)
    xp = _pad2d(x2, rows_p, cols_p)  # zero padding does not change the abs-sum
    return pl.pallas_call(
        _abs_sum_kernel,
        out_shape=jax.ShapeDtypeStruct((1, 1), jnp.float32),
        grid_spec=pltpu.PrefetchScalarGridSpec(
            num_scalar_prefetch=0,
            grid=(rows_p // tr,),
            in_specs=[pl.BlockSpec((tr, cols_p), lambda i: (i, 0))],
            out_specs=pl.BlockSpec(memory_space=pltpu.MemorySpace.SMEM),
            scratch_shapes=[pltpu.SMEM((1, 1), jnp.float32)],
        ),
        compiler_params=pltpu.CompilerParams(
            dimension_semantics=("arbitrary",),
        ),
    )(xp)


def _tensor_field_kernel(x_ref, w_ref, b_ref, scale_ref, o_ref, acc_ref):
    # Grid = (OUT, BATCH, K); K is the innermost reduction axis.
    k = pl.program_id(2)

    @pl.when(k == 0)
    def _():
        acc_ref[...] = jnp.zeros_like(acc_ref)

    # In-kernel cast of the f32 x tile to the compute dtype (hidden under the MXU).
    x = x_ref[...].astype(w_ref.dtype)
    acc_ref[...] += jnp.dot(x, w_ref[...], preferred_element_type=jnp.float32)

    @pl.when(k == pl.num_programs(2) - 1)
    def _():
        # f32 epilogue: bias + uniform metric scale, then cast to the output dtype.
        o_ref[...] = ((acc_ref[...] + b_ref[...]) * scale_ref[0, 0]).astype(o_ref.dtype)


def _tensor_field_forward(x_p, w_eff_p, bias_p, scale_11, *, tb, tk, tout,
                          out_dtype, vmem_limit):
    b_p, in_p = x_p.shape
    out_p = w_eff_p.shape[1]
    grid = (out_p // tout, b_p // tb, in_p // tk)  # (OUT, BATCH, K); K innermost
    return pl.pallas_call(
        _tensor_field_kernel,
        out_shape=jax.ShapeDtypeStruct((b_p, out_p), out_dtype),
        grid_spec=pltpu.PrefetchScalarGridSpec(
            num_scalar_prefetch=0,
            grid=grid,
            in_specs=[
                pl.BlockSpec((tb, tk), lambda j, i, k: (i, k)),       # x tile (f32)
                pl.BlockSpec((tk, tout), lambda j, i, k: (k, j)),     # W_eff tile
                pl.BlockSpec((1, tout), lambda j, i, k: (0, j)),      # bias tile (f32)
                pl.BlockSpec(memory_space=pltpu.MemorySpace.SMEM),    # (1,1) scale
            ],
            out_specs=pl.BlockSpec((tb, tout), lambda j, i, k: (i, j)),
            scratch_shapes=[pltpu.VMEM((tb, tout), jnp.float32)],     # f32 accumulator
        ),
        compiler_params=pltpu.CompilerParams(
            dimension_semantics=("parallel", "parallel", "arbitrary"),
            vmem_limit_bytes=int(vmem_limit),
        ),
    )(x_p, w_eff_p, bias_p, scale_11)


# ----------------------------------------------------------------------------
# Host-side module (stateful scalar logic mirrors the PyTorch module exactly)
# ----------------------------------------------------------------------------
class TensorFieldLayer:
    def __init__(
        self,
        in_features,
        out_features,
        base_curvature=-0.2,
        phase=0.5,
        rotation=0.25,
        adapt_rate=0.05,
        feedback_weight=0.3,
        memory_inertia=0.7,
        max_memory=32,
        key=None,
        compute_dtype=jnp.bfloat16,
        out_dtype=jnp.float32,
    ):
        self.in_features = in_features
        self.out_features = out_features
        self.base_curvature = base_curvature
        self.curvature = base_curvature
        self.phase = phase
        self.rotation = rotation
        self.adapt_rate = adapt_rate
        self.feedback_weight = feedback_weight
        self.memory_inertia = memory_inertia
        self.baseline_energy = 0.5 * in_features
        self.compute_dtype = compute_dtype
        self.out_dtype = out_dtype
        self.memory = {
            "curvature_trace": [],
            "energy_trace": [],
            "feedback_trace": [],
            "clusters": {
                "low_energy": [],
                "high_feedback": [],
                "oscillating_curvature": [],
            },
            "max_memory": max_memory,
        }

        # Deterministic nn.Linear-style init (uniform(-1/sqrt(in), 1/sqrt(in))).
        if key is None:
            key = jax.random.PRNGKey(0)
        k_w, k_b = jax.random.split(key)
        bound = 1.0 / math.sqrt(in_features)
        # PyTorch stores weight as (out, in); keep that convention for the reference.
        self.weight = jax.random.uniform(
            k_w, (out_features, in_features), jnp.float32, -bound, bound
        )
        self.bias = jax.random.uniform(
            k_b, (out_features,), jnp.float32, -bound, bound
        )

        # Static rotation matrix: identity with a 2x2 Givens block at the top-left.
        angle = self.phase * math.pi + self.rotation
        cos_val, sin_val = math.cos(angle), math.sin(angle)
        rot = jnp.eye(in_features, dtype=jnp.float32)
        if in_features >= 2:
            rot = rot.at[0, 0].set(cos_val)
            rot = rot.at[0, 1].set(-sin_val)
            rot = rot.at[1, 0].set(sin_val)
            rot = rot.at[1, 1].set(cos_val)
        self.rotation_matrix = rot

        # Generation-aware VMEM budgeting (48 MiB on 128-MiB parts, 24 MiB on v7x 64 MiB).
        self.vmem_capacity = _vmem_capacity_bytes()
        self.vmem_budget = max(8 * 1024 * 1024, (self.vmem_capacity * 3) // 8)

        # Padded problem sizes and static tile sizes (lane-dense, MXU-friendly).
        self.in_p = max(_LANE, _round_up(in_features, _LANE))
        self.out_p = max(_LANE, _round_up(out_features, _LANE))
        self.tout = _pick_tile(self.out_p)
        self.tk = _pick_tile(self.in_p)

        # Fold the static rotation into the weight ONCE (R only changes at init):
        # W_eff = R @ W.T -> (IN, OUT); zero-pad to (IN_p, OUT_p).
        w_eff = self.rotation_matrix @ self.weight.T
        self.w_eff_p = _pad2d(w_eff, self.in_p, self.out_p).astype(compute_dtype)
        self.bias_p = _pad2d(self.bias.reshape(1, -1), 1, self.out_p)   # f32

    # --- tile / VMEM planning ------------------------------------------------------
    def _plan_tiles(self, batch):
        wb = jnp.dtype(self.compute_dtype).itemsize
        ob = jnp.dtype(self.out_dtype).itemsize
        tk, tout = self.tk, self.tout
        # Double-buffered W_eff + bias tiles (independent of tb).
        fixed = 2 * (tk * tout * wb + tout * 4)
        # Per-batch-row cost: x tile (f32, 2x) + out tile (2x) + f32 acc scratch (1x).
        per_tb = 2 * (tk * 4 + tout * ob) + tout * 4
        avail = self.vmem_budget - fixed
        tb_cap = avail // per_tb if avail > 0 else _SUBLANE
        tb_cap = max(_SUBLANE, min(1024, (tb_cap // _SUBLANE) * _SUBLANE))
        # Grow tb toward the whole batch -> W_eff streamed from HBM exactly once.
        tb = min(tb_cap, _round_up(max(batch, 1), _SUBLANE))
        b_p = _round_up(max(batch, 1), tb)
        footprint = fixed + tb * per_tb
        vmem_limit = min((self.vmem_capacity * 3) // 4,
                         max(footprint + 8 * 1024 * 1024, 16 * 1024 * 1024))
        return tb, b_p, int(vmem_limit)

    # --- stateful host-scalar logic (identical to the PyTorch version) --------------
    def _update_memory(self, energy, feedback_energy):
        mem = self.memory
        mem["curvature_trace"].append(self.curvature)
        mem["energy_trace"].append(energy)
        mem["feedback_trace"].append(feedback_energy)
        for k in ["curvature_trace", "energy_trace", "feedback_trace"]:
            if len(mem[k]) > mem["max_memory"]:
                mem[k] = mem[k][-mem["max_memory"]:]

    def _update_clusters(self):
        mem = self.memory
        if len(mem["energy_trace"]) < 2:
            return
        energy = mem["energy_trace"][-1]
        feedback = mem["feedback_trace"][-1]
        curvature_change = abs(mem["curvature_trace"][-1] - mem["curvature_trace"][-2])
        if energy < self.baseline_energy * 0.8:
            mem["clusters"]["low_energy"].append(energy)
        if feedback > energy and feedback > self.baseline_energy:
            mem["clusters"]["high_feedback"].append(feedback)
        if curvature_change > 0.05:
            mem["clusters"]["oscillating_curvature"].append(curvature_change)
        for k in mem["clusters"]:
            if len(mem["clusters"][k]) > mem["max_memory"]:
                mem["clusters"][k] = mem["clusters"][k][-mem["max_memory"]:]

    def _cluster_modulation(self, energy, feedback_energy):
        mem = self.memory["clusters"]
        factor = 1.0
        if any(abs(e - energy) < 0.1 for e in mem["low_energy"]):
            factor *= 0.8
        if any(abs(f - feedback_energy) < 0.1 for f in mem["high_feedback"]):
            factor *= 1.3
        if len(mem["oscillating_curvature"]) >= 3:
            factor *= 1.1
        return factor

    # --- forward --------------------------------------------------------------------
    def forward(self, x, external_feedback=None):
        assert x.shape[1] == self.in_features, (
            f"Mismatched input shape: {x.shape}, expected (?, {self.in_features})"
        )
        x = jnp.asarray(x, jnp.float32)
        batch = x.shape[0]

        tb, b_p, vmem_limit = self._plan_tiles(batch)

        # Pad once in f32; this same buffer feeds the energy reduction and the matmul
        # (in-kernel cast to compute_dtype), and its dispatch overlaps the host pull.
        x_p = _pad2d(x, b_p, self.in_p)

        e_x = _abs_sum_energy(x_p, row_tile_hint=tb)
        if external_feedback is not None:
            e_fb = _abs_sum_energy(external_feedback)
            ex_h, efb_h = jax.device_get((e_x, e_fb))   # single blocking pull
            energy = float(ex_h[0, 0])
            feedback_energy = float(efb_h[0, 0])
        else:
            energy = float(jax.device_get(e_x)[0, 0])
            feedback_energy = 0.0

        self._update_memory(energy, feedback_energy)
        self._update_clusters()

        delta_curvature = self.adapt_rate * (energy - self.baseline_energy)
        delta_curvature += self.feedback_weight * self.adapt_rate * (
            feedback_energy - self.baseline_energy
        )
        cluster_modifier = self._cluster_modulation(energy, feedback_energy)
        delta_curvature *= cluster_modifier
        new_curvature = self.base_curvature + delta_curvature
        self.curvature = (
            self.memory_inertia * self.curvature
            + (1.0 - self.memory_inertia) * new_curvature
        )

        scale = jnp.full((1, 1), 1.0 + self.curvature, dtype=jnp.float32)
        out_full = _tensor_field_forward(
            x_p, self.w_eff_p, self.bias_p, scale,
            tb=tb, tk=self.tk, tout=self.tout,
            out_dtype=self.out_dtype, vmem_limit=vmem_limit,
        )
        return out_full[:batch, :self.out_features]

    __call__ = forward


# ----------------------------------------------------------------------------
# Pure-JAX reference for correctness checking (original two-matmul formulation)
# ----------------------------------------------------------------------------
def _reference_forward(x, rot, weight, bias, curvature):
    rotated = x.astype(jnp.float32) @ rot
    projected = rotated @ weight.T + bias
    return projected * (1.0 + curvature)


if __name__ == "__main__":
    in_features = 16
    out_features = 32
    batch = 2

    key = jax.random.PRNGKey(0)
    k_x, k_fb, k_params, k_x2, k_fb2, k_params2 = jax.random.split(key, 6)
    x = jax.random.normal(k_x, (batch, in_features), dtype=jnp.float32)
    external_feedback = jax.random.normal(k_fb, (batch, in_features), dtype=jnp.float32)

    # f32 compute path: tight check against the two-matmul reference.
    layer_f32 = TensorFieldLayer(in_features, out_features, key=k_params,
                                 compute_dtype=jnp.float32)
    out_f32 = jax.block_until_ready(layer_f32(x, external_feedback))
    ref_f32 = _reference_forward(x, layer_f32.rotation_matrix, layer_f32.weight,
                                 layer_f32.bias, layer_f32.curvature)
    assert out_f32.shape == (batch, out_features)
    assert jnp.allclose(out_f32, ref_f32, atol=1e-4, rtol=1e-4), "f32 mismatch vs reference"

    # Default bf16-input / f32-accumulate path: looser tolerance vs f32 reference.
    layer_bf16 = TensorFieldLayer(in_features, out_features, key=k_params)
    out_bf16 = jax.block_until_ready(layer_bf16(x, external_feedback))
    ref_bf16 = _reference_forward(x, layer_bf16.rotation_matrix, layer_bf16.weight,
                                  layer_bf16.bias, layer_bf16.curvature)
    assert out_bf16.shape == (batch, out_features)
    assert jnp.allclose(out_bf16, ref_bf16, atol=5e-2, rtol=5e-2), "bf16 mismatch vs reference"

    # Second step (no feedback) exercises the stateful curvature / memory / cluster logic.
    out_step2 = jax.block_until_ready(layer_bf16(x, None))
    ref_step2 = _reference_forward(x, layer_bf16.rotation_matrix, layer_bf16.weight,
                                   layer_bf16.bias, layer_bf16.curvature)
    assert jnp.allclose(out_step2, ref_step2, atol=5e-2, rtol=5e-2), "step-2 mismatch"

    # K-tiling / accumulator path (in_p=768 -> 3 K-steps) with padded odd batch, f32.
    in_big, out_big, batch_big = 768, 200, 5
    x_big = jax.random.normal(k_x2, (batch_big, in_big), dtype=jnp.float32)
    fb_big = jax.random.normal(k_fb2, (batch_big, in_big), dtype=jnp.float32)
    layer_big = TensorFieldLayer(in_big, out_big, key=k_params2,
                                 compute_dtype=jnp.float32)
    out_big_arr = jax.block_until_ready(layer_big(x_big, fb_big))
    ref_big = _reference_forward(x_big, layer_big.rotation_matrix, layer_big.weight,
                                 layer_big.bias, layer_big.curvature)
    assert out_big_arr.shape == (batch_big, out_big)
    assert jnp.allclose(out_big_arr, ref_big, atol=2e-1, rtol=2e-2), "K-tiled mismatch"

    print("KERNEL_OK")
</pallas_src>

<mosaic_0001>
module attributes {stable_mosaic.version = 11 : i64} {
  func.func @_abs_sum_kernel(%arg0: i32, %arg1: memref<8x128xf32, #tpu.memory_space<vmem>>, %arg2: memref<1x1xf32, #tpu.memory_space<smem>>, %arg3: memref<1x1xf32, #tpu.memory_space<smem>>) attributes {dimension_semantics = [#tpu.dimension_semantics<arbitrary>], iteration_bounds = array<i64: 1>, scalar_prefetch = 0 : i64, scratch_operands = 1 : i64, tpu.core_type = #tpu.core_type<tc>, window_params = [{transform_indices = @transform_0, window_bounds = array<i64: 8, 128>}, {transform_indices = @transform_1, window_bounds = array<i64: 1, 1>}]} {
    %c0_i32 = arith.constant 0 : i32
    %0 = arith.cmpi eq, %arg0, %c0_i32 : i32
    %1 = arith.extui %0 : i1 to i32
    %c0_i32_0 = arith.constant 0 : i32
    %2 = arith.cmpi ne, %1, %c0_i32_0 : i32
    scf.if %2 {
      %cst_8 = arith.constant 0.000000e+00 : f32
      %c0_9 = arith.constant 0 : index
      %c0_10 = arith.constant 0 : index
      %15 = memref.load %arg3[%c0_9, %c0_10] : memref<1x1xf32, #tpu.memory_space<smem>>
      memref.store %cst_8, %arg3[%c0_9, %c0_10] : memref<1x1xf32, #tpu.memory_space<smem>>
    } else {
    }
    %c0 = arith.constant 0 : index
    %c0_1 = arith.constant 0 : index
    %3 = memref.load %arg3[%c0, %c0_1] : memref<1x1xf32, #tpu.memory_space<smem>>
    %c0_2 = arith.constant 0 : index
    %c0_3 = arith.constant 0 : index
    %4 = vector.load %arg1[%c0_2, %c0_3] : memref<8x128xf32, #tpu.memory_space<vmem>>, vector<8x128xf32>
    %5 = math.absf %4 : vector<8x128xf32>
    %6 = vector.shape_cast %5 : vector<8x128xf32> to vector<1x8x128xf32>
    %cst = arith.constant dense<0.000000e+00> : vector<1xf32>
    %7 = vector.multi_reduction <add>, %6, %cst [1, 2] : vector<1x8x128xf32> to vector<1xf32>
    %8 = vector.shape_cast %7 : vector<1xf32> to vector<1x1x1xf32>
    %9 = vector.extract %8[0, 0, 0] : f32 from vector<1x1x1xf32>
    %10 = arith.addf %3, %9 : f32
    %c0_4 = arith.constant 0 : index
    %c0_5 = arith.constant 0 : index
    %11 = memref.load %arg3[%c0_4, %c0_5] : memref<1x1xf32, #tpu.memory_space<smem>>
    memref.store %10, %arg3[%c0_4, %c0_5] : memref<1x1xf32, #tpu.memory_space<smem>>
    %c0_i32_6 = arith.constant 0 : i32
    %12 = arith.cmpi eq, %arg0, %c0_i32_6 : i32
    %13 = arith.extui %12 : i1 to i32
    %c0_i32_7 = arith.constant 0 : i32
    %14 = arith.cmpi ne, %13, %c0_i32_7 : i32
    scf.if %14 {
      %c0_8 = arith.constant 0 : index
      %c0_9 = arith.constant 0 : index
      %15 = memref.load %arg3[%c0_8, %c0_9] : memref<1x1xf32, #tpu.memory_space<smem>>
      %c0_10 = arith.constant 0 : index
      %c0_11 = arith.constant 0 : index
      %16 = memref.load %arg2[%c0_10, %c0_11] : memref<1x1xf32, #tpu.memory_space<smem>>
      memref.store %15, %arg2[%c0_10, %c0_11] : memref<1x1xf32, #tpu.memory_space<smem>>
    } else {
    }
    return
  }
  func.func @transform_0(%arg0: i32) -> (i32, i32) {
    %c0_i32 = arith.constant 0 : i32
    %c0_i32_0 = arith.constant 0 : i32
    return %arg0, %c0_i32 : i32, i32
  }
  func.func @transform_1(%arg0: i32) -> (i32, i32) {
    %c0_i32 = arith.constant 0 : i32
    %c0_i32_0 = arith.constant 0 : i32
    %c0_i32_1 = arith.constant 0 : i32
    return %c0_i32, %c0_i32_0 : i32, i32
  }
}

</mosaic_0001>

<llo_original>
// kernel: tpu_custom_call.1
$region0: #{tpu_custom_call.1}
  #allocation0 [shape = 'u32[]', space=smem, size = 0x4, offset = 0x4, fixed_abs, tag = 'smem constant byte address 0x4 - core index']
  #allocation1 [shape = 'u32[144,128]{1,0:T(1,128)}', space=vmem, size = 0x12000, scoped, tag = 'internal scratch']
  #allocation2 [shape = 'f32[1,1]{1,0:T(1,128)}', space=smem, size = 0x200, scoped, tag = 'scratch operand']
  %s0 = inlined_call_operand.hbm [shape: f32[8,128], index: 0, kind: input, shape index: {}]
  %s1 = inlined_call_operand.hbm [shape: f32[1,1], index: 1, kind: output, shape index: {}]
  %s2 = sld [smem:[#allocation0]]
  $region26: #{tpu_custom_call.1} parent=0
    _
  %s4 = ssub.s32 1, %s2
  %s5 = scalar_select 0, %s4, %s2
  $region1: #{tpu_custom_call.1} parent=0
    #allocation3 [shape = 'u8[4096]{0}', space=vmem, size = 0x1000, scoped, tag = 'input window, operand 0, single buffered']
    #allocation4 [shape = 's32[1]{0}', space=sflag, size = 0x4, scoped, tag = 'scoped memory for tpu_custom_call.1']
    #allocation5 [shape = 's32[1]{0}', space=sflag, size = 0x4, scoped, tag = 'scoped memory for tpu_custom_call.1']
    #allocation6 [shape = 'u8[512]{0}', space=smem, size = 0x200, scoped, tag = 'output window, operand 0, single buffered']
    %6 = vsyncpa [#allocation4], 0
    %7 = vsyncpa [#allocation5], 0
    // Predicated region
    $region2: #{tpu_custom_call.1} parent=1 // pred_check
      _
    $region3: #{tpu_custom_call.1} parent=1 // pred_check_branch
      %9 = sbr.rel (0) target = $region5
    $region4: #{tpu_custom_call.1} parent=1 // pred_region
      %s11 = ssub.s32 128, 128
      %12 = vsyncadd [#allocation4], %s11
      %s14 = sshll.u32 [#allocation3], 4
      %s15 = int_to_ptr.vmem [resolvable:$true] %s14
      %17 = dma.hbm_to_vmem [thread:$0]  %s0, 128, %s15, [#allocation4]
    $region5: #{tpu_custom_call.1} parent=1 // pred_fallthru
      _
    // Predicated region
    $region6: #{tpu_custom_call.1} parent=1 // pred_check
      _
    $region7: #{tpu_custom_call.1} parent=1 // pred_check_branch
      %19 = sbr.rel (0) target = $region9
    $region8: #{tpu_custom_call.1} parent=1 // pred_region
      %20 = dma.done [#allocation4], 128
    $region9: #{tpu_custom_call.1} parent=1 // pred_fallthru
      _
    %p21 = scmp.eq.s32.totalorder 0, 0
    // Predicated region
    $region10: #{tpu_custom_call.1} parent=1 // pred_check
      %p22 = pneg %p21
    $region11: #{tpu_custom_call.1} parent=1 // pred_check_branch
      %24 = sbr.rel (%p22) target = $region13
    $region12: #{tpu_custom_call.1} parent=1 // pred_region
      %s25 = scalar_lea.smem [#allocation2], 0
      %26 = sst [smem:[%s25]] 0.0
    $region13: #{tpu_custom_call.1} parent=1 // pred_fallthru
      _
    %s27 = sld [smem:[#allocation2]]
    %v28 = vld [vmem:[#allocation3] sm:$0xff]
    %v29 = vand.u32 2147483647, %v28
    %30 = vadd.xlane.f32.xlu0 %v29
    %v31 = vpop.xlane.xlu0 %30
    %v32 = vrot.slane %v31, 4
    %v33 = vadd.f32 %v31, %v32
    %v34 = vrot.slane %v33, 2
    %v35 = vadd.f32 %v33, %v34
    %v36 = vrot.slane %v35, 1
    %v37 = vadd.f32 %v35, %v36
    %s38 = vtos %v37
    %s39 = sadd.f32 %s27, %s38
    %s40 = scalar_lea.smem [#allocation2], 0
    %41 = sst [smem:[%s40]] %s39
    // Predicated region
    $region14: #{tpu_custom_call.1} parent=1 // pred_check
      %p42 = pneg %p21
    $region15: #{tpu_custom_call.1} parent=1 // pred_check_branch
      %44 = sbr.rel (%p42) target = $region17
    $region16: #{tpu_custom_call.1} parent=1 // pred_region
      %s45 = sld [smem:[#allocation2]]
      %s46 = scalar_lea.smem [#allocation6], 0
      %47 = sst [smem:[%s46]] %s45
    $region17: #{tpu_custom_call.1} parent=1 // pred_fallthru
      _
    // Predicated region
    $region18: #{tpu_custom_call.1} parent=1 // pred_check
      _
    $region19: #{tpu_custom_call.1} parent=1 // pred_check_branch
      %49 = sbr.rel (0) target = $region21
    $region20: #{tpu_custom_call.1} parent=1 // pred_region
      %s51 = ssub.s32 16, 16
      %52 = vsyncadd [#allocation5], %s51
      %55 = dma.smem_to_hbm [#allocation6], 16, %s1, [#allocation5]
    $region21: #{tpu_custom_call.1} parent=1 // pred_fallthru
      _
    // Predicated region
    $region22: #{tpu_custom_call.1} parent=1 // pred_check
      _
    $region23: #{tpu_custom_call.1} parent=1 // pred_check_branch
      %57 = sbr.rel (0) target = $region25
    $region24: #{tpu_custom_call.1} parent=1 // pred_region
      %58 = dma.done [#allocation5], 16
    $region25: #{tpu_custom_call.1} parent=1 // pred_fallthru
      _
    %59 = sfence
    %60 = vsyncpa [#allocation4], 1
    %61 = vsyncpa [#allocation5], 1

</llo_original>
